<compile_context>
chip_gen: v5e
topology: v5e:2x2
jax: 0.10.0
libtpu: 0.0.40
codegen_flags: <defaults>
</compile_context>

<pallas_src>
import functools

import jax
import jax.numpy as jnp
from jax.experimental import pallas as pl
from jax.experimental.pallas import tpu as pltpu


def _round_up(x, m):
    return (x + m - 1) // m * m


def _encoder_kernel(x_ref, w1_ref, b1_ref, wh_ref, bh_ref, noise_ref,
                    qm_ref, qv_ref, z_ref, h_acc,
                    *, var_eps, n_out_pad):
    k = pl.program_id(1)

    @pl.when(k == 0)
    def _():
        h_acc[...] = jnp.zeros_like(h_acc)

    # Stream the K (gene) dimension of the first linear layer through the MXU,
    # accumulating in f32 VMEM scratch.  BatchNorm's eval-mode affine is
    # pre-folded into w1/b1, so this *is* BN(Linear(x)) minus the bias.
    h_acc[...] += jnp.dot(x_ref[...], w1_ref[...],
                          preferred_element_type=jnp.float32)

    @pl.when(k == pl.num_programs(1) - 1)
    def _():
        # bias (already BN-folded) + ReLU; dropout is identity in eval mode.
        h = jnp.maximum(h_acc[...] + b1_ref[...], 0.0)            # [TB, H_pad] f32

        # Fused mean|var heads: single MXU pass over a 2*n_out_pad-wide weight.
        heads = jnp.dot(h.astype(wh_ref.dtype), wh_ref[...],
                        preferred_element_type=jnp.float32) + bh_ref[...]

        q_m = heads[:, :n_out_pad]
        q_v = jnp.exp(heads[:, n_out_pad:]) + jnp.float32(var_eps)
        # Reparameterized sample; identity z_transformation ('normal').
        z = q_m + jnp.sqrt(q_v) * noise_ref[...]

        qm_ref[...] = q_m
        qv_ref[...] = q_v
        z_ref[...] = z


def encoder_forward(x, params, noise, *, var_eps=1e-4, bn_eps=1e-3,
                    block_b=512, block_k=512, compute_dtype=jnp.bfloat16):
    """Fused Encoder forward.

    x:      [B, n_input]  float32
    noise:  [B, n_output] float32 standard-normal draws for rsample()
    params: dict from init_params()
    block_k must be a multiple of 128.
    Returns (q_m, q_v, latent), each [B, n_output] float32.
    """
    B, n_input = x.shape
    n_hidden = params["w1"].shape[1]
    n_output = params["wm"].shape[1]
    f32 = jnp.float32
    csize = jnp.dtype(compute_dtype).itemsize

    # ---- padded / tiled sizes (lane-dense: last dims -> multiples of 128) ----
    H_pad = _round_up(n_hidden, 128)
    n_out_pad = _round_up(n_output, 128)
    B_pad16 = _round_up(B, 16)
    TB = min(block_b, B_pad16)
    B_pad = _round_up(B_pad16, TB)
    K_pad128 = _round_up(n_input, 128)
    TK = min(block_k, K_pad128)
    K_pad = _round_up(K_pad128, TK)

    # ---- fold BatchNorm1d (eval: running_mean=0, running_var=1) into layer 1 -
    scale = params["gamma"].astype(f32) * jax.lax.rsqrt(
        jnp.float32(1.0) + jnp.float32(bn_eps))                   # [1, H]
    w1f = params["w1"].astype(f32) * scale                        # [n_in, H]
    b1f = params["b1"].astype(f32) * scale + params["beta"].astype(f32)

    def pad2(a, rows, cols):
        return jnp.pad(a, ((0, rows - a.shape[0]), (0, cols - a.shape[1])))

    # ---- pack / pad operands --------------------------------------------------
    w1p = pad2(w1f, K_pad, H_pad).astype(compute_dtype)           # [K_pad, H_pad]
    b1p = pad2(b1f, 1, H_pad)                                     # [1, H_pad] f32
    whp = jnp.concatenate(
        [pad2(params["wm"].astype(f32), H_pad, n_out_pad),
         pad2(params["wv"].astype(f32), H_pad, n_out_pad)],
        axis=1).astype(compute_dtype)                             # [H_pad, 2*n_out_pad]
    bhp = jnp.concatenate(
        [pad2(params["bm"].astype(f32), 1, n_out_pad),
         pad2(params["bv"].astype(f32), 1, n_out_pad)], axis=1)   # [1, 2*n_out_pad] f32
    xp = pad2(x.astype(f32), B_pad, K_pad).astype(compute_dtype)  # [B_pad, K_pad]
    noisep = pad2(noise.astype(f32), B_pad, n_out_pad)            # [B_pad, n_out_pad] f32

    grid = (B_pad // TB, K_pad // TK)

    in_specs = [
        pl.BlockSpec((TB, TK), lambda b, k: (b, k)),              # x tile (streams)
        pl.BlockSpec((TK, H_pad), lambda b, k: (k, 0)),           # w1 K-slice (streams)
        pl.BlockSpec((1, H_pad), lambda b, k: (0, 0)),            # folded bias (resident)
        pl.BlockSpec((H_pad, 2 * n_out_pad), lambda b, k: (0, 0)),# fused head W (resident)
        pl.BlockSpec((1, 2 * n_out_pad), lambda b, k: (0, 0)),    # fused head bias
        pl.BlockSpec((TB, n_out_pad), lambda b, k: (b, 0)),       # noise tile
    ]
    out_specs = [
        pl.BlockSpec((TB, n_out_pad), lambda b, k: (b, 0)),
        pl.BlockSpec((TB, n_out_pad), lambda b, k: (b, 0)),
        pl.BlockSpec((TB, n_out_pad), lambda b, k: (b, 0)),
    ]
    out_shapes = (
        jax.ShapeDtypeStruct((B_pad, n_out_pad), f32),            # q_m
        jax.ShapeDtypeStruct((B_pad, n_out_pad), f32),            # q_v
        jax.ShapeDtypeStruct((B_pad, n_out_pad), f32),            # latent
    )

    # Explicit VMEM budget: double-buffered streamed tiles + resident weights
    # + 3 output tiles + accumulator scratch, with 2x headroom, capped for v7x.
    need = (2 * TB * TK * csize
            + 2 * TK * H_pad * csize
            + 2 * H_pad * 2 * n_out_pad * csize
            + 2 * TB * n_out_pad * 4
            + 2 * 3 * TB * n_out_pad * 4
            + TB * H_pad * 4
            + (2 * H_pad + 4 * n_out_pad) * 4)
    vmem_limit = int(min(max(2 * need, 16 << 20), 48 << 20))

    cost = pl.CostEstimate(
        flops=2 * B_pad * K_pad * H_pad + 2 * B_pad * H_pad * 2 * n_out_pad,
        transcendentals=B_pad * n_out_pad,
        bytes_accessed=((B_pad * K_pad + K_pad * H_pad + H_pad * 2 * n_out_pad) * csize
                        + 4 * (4 * B_pad * n_out_pad)
                        + 4 * (H_pad + 2 * n_out_pad)),
    )

    kernel = functools.partial(_encoder_kernel, var_eps=var_eps,
                               n_out_pad=n_out_pad)

    qm_p, qv_p, z_p = pl.pallas_call(
        kernel,
        out_shape=out_shapes,
        grid_spec=pltpu.PrefetchScalarGridSpec(
            num_scalar_prefetch=0,
            grid=grid,
            in_specs=in_specs,
            out_specs=out_specs,
            scratch_shapes=[pltpu.VMEM((TB, H_pad), jnp.float32)],
        ),
        compiler_params=pltpu.CompilerParams(
            dimension_semantics=("parallel", "arbitrary"),
            vmem_limit_bytes=vmem_limit,
        ),
        cost_estimate=cost,
    )(xp, w1p, b1p, whp, bhp, noisep)

    return (qm_p[:B, :n_output], qv_p[:B, :n_output], z_p[:B, :n_output])


def init_params(key, n_input, n_hidden, n_output):
    """Deterministic parameter init (uniform, PyTorch-Linear-like bounds)."""
    ks = jax.random.split(key, 6)

    def lin(kw, kb, fan_in, fan_out):
        bound = 1.0 / jnp.sqrt(jnp.float32(fan_in))
        w = jax.random.uniform(kw, (fan_in, fan_out), jnp.float32, -bound, bound)
        b = jax.random.uniform(kb, (1, fan_out), jnp.float32, -bound, bound)
        return w, b

    w1, b1 = lin(ks[0], ks[1], n_input, n_hidden)
    wm, bm = lin(ks[2], ks[3], n_hidden, n_output)
    wv, bv = lin(ks[4], ks[5], n_hidden, n_output)
    return {
        "w1": w1, "b1": b1,
        "gamma": jnp.ones((1, n_hidden), jnp.float32),   # BatchNorm1d weight
        "beta": jnp.zeros((1, n_hidden), jnp.float32),   # BatchNorm1d bias
        "wm": wm, "bm": bm,
        "wv": wv, "bv": bv,
    }


def _reference(x, p, noise, var_eps=1e-4, bn_eps=1e-3):
    """Pure-JAX f32 reference matching the PyTorch module in eval mode."""
    h = x @ p["w1"] + p["b1"]
    h = h * (p["gamma"] / jnp.sqrt(1.0 + bn_eps)) + p["beta"]
    h = jnp.maximum(h, 0.0)
    q_m = h @ p["wm"] + p["bm"]
    q_v = jnp.exp(h @ p["wv"] + p["bv"]) + var_eps
    z = q_m + jnp.sqrt(q_v) * noise
    return q_m, q_v, z


# TODO(synk): categorical covariates (*cat_list one-hot concat), n_layers > 1,
# distribution='ln' (softmax z_transformation), and train-mode dropout /
# batch-norm batch statistics are not implemented (n_cat_list=None, eval mode).
# TODO(synk): noise is generated with jax.random in the wrapper for exact
# parity; pltpu.prng_seed + stateful_normal could generate it on-chip instead.

if __name__ == "__main__":
    B, n_input, n_hidden, n_output = 20, 48, 32, 16

    key = jax.random.PRNGKey(0)
    k_x, k_p, k_n = jax.random.split(key, 3)

    x = jax.random.normal(k_x, (B, n_input), jnp.float32)
    params = init_params(k_p, n_input, n_hidden, n_output)
    noise = jax.random.normal(k_n, (B, n_output), jnp.float32)

    rm, rv, rz = _reference(x, params, noise)

    # f32-MXU path: matches the reference up to reassociation of the BN fold.
    qm32, qv32, z32 = encoder_forward(x, params, noise, compute_dtype=jnp.float32)
    jax.block_until_ready((qm32, qv32, z32))
    assert jnp.allclose(qm32, rm, atol=1e-4, rtol=1e-4)
    assert jnp.allclose(qv32, rv, atol=1e-4, rtol=1e-4)
    assert jnp.allclose(z32, rz, atol=1e-4, rtol=1e-4)

    # Default bf16-MXU path (f32 accumulation + f32 epilogue): loose tolerance.
    q_m, q_v, latent = encoder_forward(x, params, noise)
    jax.block_until_ready((q_m, q_v, latent))
    assert jnp.allclose(q_m, rm, atol=5e-2, rtol=5e-2)
    assert jnp.allclose(q_v, rv, atol=5e-2, rtol=5e-2)
    assert jnp.allclose(latent, rz, atol=5e-2, rtol=5e-2)

    print("KERNEL_OK")
</pallas_src>

<mosaic_0001>
module attributes {stable_mosaic.version = 11 : i64} {
  func.func @_encoder_kernel(%arg0: i32, %arg1: i32, %arg2: memref<32x128xf32, #tpu.memory_space<vmem>>, %arg3: memref<128x128xf32, #tpu.memory_space<vmem>>, %arg4: memref<1x128xf32, #tpu.memory_space<vmem>>, %arg5: memref<128x256xf32, #tpu.memory_space<vmem>>, %arg6: memref<1x256xf32, #tpu.memory_space<vmem>>, %arg7: memref<32x128xf32, #tpu.memory_space<vmem>>, %arg8: memref<32x128xf32, #tpu.memory_space<vmem>>, %arg9: memref<32x128xf32, #tpu.memory_space<vmem>>, %arg10: memref<32x128xf32, #tpu.memory_space<vmem>>, %arg11: memref<32x128xf32, #tpu.memory_space<vmem>>) attributes {dimension_semantics = [#tpu.dimension_semantics<parallel>, #tpu.dimension_semantics<arbitrary>], iteration_bounds = array<i64: 1, 1>, scalar_prefetch = 0 : i64, scratch_operands = 1 : i64, tpu.core_type = #tpu.core_type<tc>, window_params = [{transform_indices = @transform_0, window_bounds = array<i64: 32, 128>}, {transform_indices = @transform_1, window_bounds = array<i64: 128, 128>}, {pipeline_mode = #tpu.pipeline_mode<synchronous>, transform_indices = @transform_2, window_bounds = array<i64: 1, 128>}, {pipeline_mode = #tpu.pipeline_mode<synchronous>, transform_indices = @transform_3, window_bounds = array<i64: 128, 256>}, {pipeline_mode = #tpu.pipeline_mode<synchronous>, transform_indices = @transform_4, window_bounds = array<i64: 1, 256>}, {transform_indices = @transform_5, window_bounds = array<i64: 32, 128>}, {transform_indices = @transform_6, window_bounds = array<i64: 32, 128>}, {transform_indices = @transform_7, window_bounds = array<i64: 32, 128>}, {transform_indices = @transform_8, window_bounds = array<i64: 32, 128>}]} {
    %c0_i32 = arith.constant 0 : i32
    %0 = arith.cmpi eq, %arg1, %c0_i32 : i32
    %1 = arith.extui %0 : i1 to i32
    %c0_i32_0 = arith.constant 0 : i32
    %2 = arith.cmpi ne, %1, %c0_i32_0 : i32
    scf.if %2 {
      %cst_10 = arith.constant 0.000000e+00 : f32
      %12 = vector.broadcast %cst_10 : f32 to vector<32x128xf32>
      %c0_11 = arith.constant 0 : index
      %c0_12 = arith.constant 0 : index
      %13 = vector.load %arg11[%c0_11, %c0_12] : memref<32x128xf32, #tpu.memory_space<vmem>>, vector<32x128xf32>
      tpu.vector_store %arg11[%c0_11, %c0_12], %12 {strides = array<i32>} : memref<32x128xf32, #tpu.memory_space<vmem>>, vector<32x128xf32>,
    } else {
    }
    %c0 = arith.constant 0 : index
    %c0_1 = arith.constant 0 : index
    %3 = vector.load %arg11[%c0, %c0_1] : memref<32x128xf32, #tpu.memory_space<vmem>>, vector<32x128xf32>
    %c0_2 = arith.constant 0 : index
    %c0_3 = arith.constant 0 : index
    %4 = vector.load %arg2[%c0_2, %c0_3] : memref<32x128xf32, #tpu.memory_space<vmem>>, vector<32x128xf32>
    %c0_4 = arith.constant 0 : index
    %c0_5 = arith.constant 0 : index
    %5 = vector.load %arg3[%c0_4, %c0_5] : memref<128x128xf32, #tpu.memory_space<vmem>>, vector<128x128xf32>
    %cst = arith.constant dense<0.000000e+00> : vector<32x128xf32>
    %6 = tpu.matmul %4, %5, %cst {dimension_numbers = #tpu.dot_dimension_numbers<[1], [0], [0], [1], [0, 0, 1, 1], [], []>} : vector<32x128xf32>, vector<128x128xf32>, vector<32x128xf32> -> vector<32x128xf32>
    %7 = arith.addf %3, %6 : vector<32x128xf32>
    %c0_6 = arith.constant 0 : index
    %c0_7 = arith.constant 0 : index
    %8 = vector.load %arg11[%c0_6, %c0_7] : memref<32x128xf32, #tpu.memory_space<vmem>>, vector<32x128xf32>
    tpu.vector_store %arg11[%c0_6, %c0_7], %7 {strides = array<i32>} : memref<32x128xf32, #tpu.memory_space<vmem>>, vector<32x128xf32>,
    %c0_i32_8 = arith.constant 0 : i32
    %9 = arith.cmpi eq, %arg1, %c0_i32_8 : i32
    %10 = arith.extui %9 : i1 to i32
    %c0_i32_9 = arith.constant 0 : i32
    %11 = arith.cmpi ne, %10, %c0_i32_9 : i32
    scf.if %11 {
      %c0_10 = arith.constant 0 : index
      %c0_11 = arith.constant 0 : index
      %12 = vector.load %arg11[%c0_10, %c0_11] : memref<32x128xf32, #tpu.memory_space<vmem>>, vector<32x128xf32>
      %c0_12 = arith.constant 0 : index
      %c0_13 = arith.constant 0 : index
      %13 = vector.load %arg4[%c0_12, %c0_13] : memref<1x128xf32, #tpu.memory_space<vmem>>, vector<1x128xf32>
      %14 = vector.broadcast %13 : vector<1x128xf32> to vector<32x128xf32>
      %15 = arith.addf %12, %14 : vector<32x128xf32>
      %cst_14 = arith.constant 0.000000e+00 : f32
      %16 = vector.broadcast %cst_14 : f32 to vector<32x128xf32>
      %17 = arith.maximumf %15, %16 : vector<32x128xf32>
      %c0_15 = arith.constant 0 : index
      %c0_16 = arith.constant 0 : index
      %18 = vector.load %arg5[%c0_15, %c0_16] : memref<128x256xf32, #tpu.memory_space<vmem>>, vector<128x256xf32>
      %cst_17 = arith.constant dense<0.000000e+00> : vector<32x256xf32>
      %19 = tpu.matmul %17, %18, %cst_17 {dimension_numbers = #tpu.dot_dimension_numbers<[1], [0], [0], [1], [0, 0, 1, 1], [], []>} : vector<32x128xf32>, vector<128x256xf32>, vector<32x256xf32> -> vector<32x256xf32>
      %c0_18 = arith.constant 0 : index
      %c0_19 = arith.constant 0 : index
      %20 = vector.load %arg6[%c0_18, %c0_19] : memref<1x256xf32, #tpu.memory_space<vmem>>, vector<1x256xf32>
      %21 = vector.broadcast %20 : vector<1x256xf32> to vector<32x256xf32>
      %22 = arith.addf %19, %21 : vector<32x256xf32>
      %23 = vector.extract_strided_slice %22 {offsets = [0, 0], sizes = [32, 128], strides = [1, 1]} : vector<32x256xf32> to vector<32x128xf32>
      %24 = vector.extract_strided_slice %22 {offsets = [0, 128], sizes = [32, 128], strides = [1, 1]} : vector<32x256xf32> to vector<32x128xf32>
      %25 = math.exp %24 : vector<32x128xf32>
      %cst_20 = arith.constant 9.99999974E-5 : f32
      %26 = vector.broadcast %cst_20 : f32 to vector<32x128xf32>
      %27 = arith.addf %25, %26 : vector<32x128xf32>
      %28 = math.sqrt %27 : vector<32x128xf32>
      %c0_21 = arith.constant 0 : index
      %c0_22 = arith.constant 0 : index
      %29 = vector.load %arg7[%c0_21, %c0_22] : memref<32x128xf32, #tpu.memory_space<vmem>>, vector<32x128xf32>
      %30 = arith.mulf %28, %29 : vector<32x128xf32>
      %31 = arith.addf %23, %30 : vector<32x128xf32>
      %c0_23 = arith.constant 0 : index
      %c0_24 = arith.constant 0 : index
      %32 = vector.load %arg8[%c0_23, %c0_24] : memref<32x128xf32, #tpu.memory_space<vmem>>, vector<32x128xf32>
      tpu.vector_store %arg8[%c0_23, %c0_24], %23 {strides = array<i32>} : memref<32x128xf32, #tpu.memory_space<vmem>>, vector<32x128xf32>,
      %c0_25 = arith.constant 0 : index
      %c0_26 = arith.constant 0 : index
      %33 = vector.load %arg9[%c0_25, %c0_26] : memref<32x128xf32, #tpu.memory_space<vmem>>, vector<32x128xf32>
      tpu.vector_store %arg9[%c0_25, %c0_26], %27 {strides = array<i32>} : memref<32x128xf32, #tpu.memory_space<vmem>>, vector<32x128xf32>,
      %c0_27 = arith.constant 0 : index
      %c0_28 = arith.constant 0 : index
      %34 = vector.load %arg10[%c0_27, %c0_28] : memref<32x128xf32, #tpu.memory_space<vmem>>, vector<32x128xf32>
      tpu.vector_store %arg10[%c0_27, %c0_28], %31 {strides = array<i32>} : memref<32x128xf32, #tpu.memory_space<vmem>>, vector<32x128xf32>,
    } else {
    }
    return
  }
  func.func @transform_0(%arg0: i32, %arg1: i32) -> (i32, i32) {
    %c0_i32 = arith.constant 0 : i32
    return %arg0, %arg1 : i32, i32
  }
  func.func @transform_1(%arg0: i32, %arg1: i32) -> (i32, i32) {
    %c0_i32 = arith.constant 0 : i32
    %c0_i32_0 = arith.constant 0 : i32
    return %arg1, %c0_i32 : i32, i32
  }
  func.func @transform_2(%arg0: i32, %arg1: i32) -> (i32, i32) {
    %c0_i32 = arith.constant 0 : i32
    %c0_i32_0 = arith.constant 0 : i32
    %c0_i32_1 = arith.constant 0 : i32
    return %c0_i32, %c0_i32_0 : i32, i32
  }
  func.func @transform_3(%arg0: i32, %arg1: i32) -> (i32, i32) {
    %c0_i32 = arith.constant 0 : i32
    %c0_i32_0 = arith.constant 0 : i32
    %c0_i32_1 = arith.constant 0 : i32
    return %c0_i32, %c0_i32_0 : i32, i32
  }
  func.func @transform_4(%arg0: i32, %arg1: i32) -> (i32, i32) {
    %c0_i32 = arith.constant 0 : i32
    %c0_i32_0 = arith.constant 0 : i32
    %c0_i32_1 = arith.constant 0 : i32
    return %c0_i32, %c0_i32_0 : i32, i32
  }
  func.func @transform_5(%arg0: i32, %arg1: i32) -> (i32, i32) {
    %c0_i32 = arith.constant 0 : i32
    %c0_i32_0 = arith.constant 0 : i32
    return %arg0, %c0_i32 : i32, i32
  }
  func.func @transform_6(%arg0: i32, %arg1: i32) -> (i32, i32) {
    %c0_i32 = arith.constant 0 : i32
    %c0_i32_0 = arith.constant 0 : i32
    return %arg0, %c0_i32 : i32, i32
  }
  func.func @transform_7(%arg0: i32, %arg1: i32) -> (i32, i32) {
    %c0_i32 = arith.constant 0 : i32
    %c0_i32_0 = arith.constant 0 : i32
    return %arg0, %c0_i32 : i32, i32
  }
  func.func @transform_8(%arg0: i32, %arg1: i32) -> (i32, i32) {
    %c0_i32 = arith.constant 0 : i32
    %c0_i32_0 = arith.constant 0 : i32
    return %arg0, %c0_i32 : i32, i32
  }
}

</mosaic_0001>

<llo_original>
// kernel: tpu_custom_call.1
$region0: #{tpu_custom_call.1}
  #allocation0 [shape = 'u32[]', space=smem, size = 0x4, offset = 0x4, fixed_abs, tag = 'smem constant byte address 0x4 - core index']
  #allocation1 [shape = 'u32[72,128]{1,0:T(1,128)}', space=vmem, size = 0x9000, scoped, tag = 'internal scratch']
  #allocation2 [shape = 'f32[32,128]{1,0:T(8,128)}', space=vmem, size = 0x4000, scoped, tag = 'scratch operand']
  %s0 = inlined_call_operand.hbm [shape: f32[32,128], index: 0, kind: input, shape index: {}]
  %s1 = inlined_call_operand.hbm [shape: f32[128,128], index: 1, kind: input, shape index: {}]
  %s2 = inlined_call_operand.vmem [shape: f32[1,128], index: 2, kind: input, shape index: {}]
  %s3 = inlined_call_operand.hbm [shape: f32[128,256], index: 3, kind: input, shape index: {}]
  %s4 = inlined_call_operand.vmem [shape: f32[1,256], index: 4, kind: input, shape index: {}]
  %s5 = inlined_call_operand.hbm [shape: f32[32,128], index: 5, kind: input, shape index: {}]
  %s6 = inlined_call_operand.hbm [shape: f32[32,128], index: 6, kind: output, shape index: {0}]
  %s7 = inlined_call_operand.hbm [shape: f32[32,128], index: 7, kind: output, shape index: {1}]
  %s8 = inlined_call_operand.hbm [shape: f32[32,128], index: 8, kind: output, shape index: {2}]
  %9 = xla_tuple %s6, %s7, %s8
  %s10 = sld [smem:[#allocation0]]
  $region74: #{tpu_custom_call.1} parent=0
    _
  %s12 = ssub.s32 1, %s10
  %s13 = scalar_select 0, %s12, %s10
  $region1: #{tpu_custom_call.1} parent=0
    #allocation3 [shape = 'u8[16384]{0}', space=vmem, size = 0x4000, scoped, tag = 'input window, operand 0, single buffered']
    #allocation4 [shape = 's32[1]{0}', space=sflag, size = 0x4, scoped, tag = 'scoped memory for tpu_custom_call.1']
    #allocation5 [shape = 's32[1]{0}', space=sflag, size = 0x4, scoped, tag = 'scoped memory for tpu_custom_call.1']
    #allocation6 [shape = 'u8[65536]{0}', space=vmem, size = 0x10000, scoped, tag = 'input window, operand 1, single buffered']
    #allocation7 [shape = 's32[1]{0}', space=sflag, size = 0x4, scoped, tag = 'scoped memory for tpu_custom_call.1']
    #allocation8 [shape = 'u8[131072]{0}', space=vmem, size = 0x20000, scoped, tag = 'input window, operand 3, single buffered']
    #allocation9 [shape = 'u8[16384]{0}', space=vmem, size = 0x4000, scoped, tag = 'input window, operand 5, single buffered']
    #allocation10 [shape = 's32[1]{0}', space=sflag, size = 0x4, scoped, tag = 'scoped memory for tpu_custom_call.1']
    #allocation11 [shape = 'u8[16384]{0}', space=vmem, size = 0x4000, scoped, tag = 'output window, operand 0, single buffered']
    #allocation12 [shape = 'u8[16384]{0}', space=vmem, size = 0x4000, scoped, tag = 'output window, operand 1, single buffered']
    #allocation13 [shape = 's32[1]{0}', space=sflag, size = 0x4, scoped, tag = 'scoped memory for tpu_custom_call.1']
    #allocation14 [shape = 'u8[16384]{0}', space=vmem, size = 0x4000, scoped, tag = 'output window, operand 2, single buffered']
    %14 = vsyncpa [#allocation4], 0
    %15 = vsyncpa [#allocation7], 0
    %16 = vsyncpa [#allocation10], 0
    %17 = vsyncpa [#allocation5], 0
    %18 = vsyncpa [#allocation13], 0
    // Predicated region
    $region2: #{tpu_custom_call.1} parent=1 // pred_check
      _
    $region3: #{tpu_custom_call.1} parent=1 // pred_check_branch
      %20 = sbr.rel (0) target = $region5
    $region4: #{tpu_custom_call.1} parent=1 // pred_region
      %22 = vsyncadd [#allocation4], 0
      %s23 = sshll.u32 %s0, 4
      %s24 = int_to_ptr.hbm [resolvable:$true] %s23
      %s25 = sshll.u32 [#allocation3], 4
      %s26 = int_to_ptr.vmem [resolvable:$true] %s25
      %31 = dma.hbm_to_vmem [thread:$0]  %s24, 512, %s26, [#allocation4], 128, 128, 8
    $region5: #{tpu_custom_call.1} parent=1 // pred_fallthru
      _
    // Predicated region
    $region6: #{tpu_custom_call.1} parent=1 // pred_check
      _
    $region7: #{tpu_custom_call.1} parent=1 // pred_check_branch
      %33 = sbr.rel (0) target = $region9
    $region8: #{tpu_custom_call.1} parent=1 // pred_region
      %35 = vsyncadd [#allocation7], 0
      %s36 = sshll.u32 %s1, 4
      %s37 = int_to_ptr.hbm [resolvable:$true] %s36
      %s38 = sshll.u32 [#allocation6], 4
      %s39 = int_to_ptr.vmem [resolvable:$true] %s38
      %44 = dma.hbm_to_vmem [thread:$0]  %s37, 2048, %s39, [#allocation7], 128, 128, 8
    $region9: #{tpu_custom_call.1} parent=1 // pred_fallthru
      _
    // Predicated region
    $region10: #{tpu_custom_call.1} parent=1 // pred_check
      _
    $region11: #{tpu_custom_call.1} parent=1 // pred_check_branch
      %46 = sbr.rel (0) target = $region13
    $region12: #{tpu_custom_call.1} parent=1 // pred_region
      _
    $region13: #{tpu_custom_call.1} parent=1 // pred_fallthru
      _
    // Predicated region
    $region14: #{tpu_custom_call.1} parent=1 // pred_check
      _
    $region15: #{tpu_custom_call.1} parent=1 // pred_check_branch
      %48 = sbr.rel (0) target = $region17
    $region16: #{tpu_custom_call.1} parent=1 // pred_region
      %50 = vsyncadd [#allocation7], 0
      %s51 = sshll.u32 %s3, 4
      %s52 = int_to_ptr.hbm [resolvable:$true] %s51
      %s53 = sshll.u32 [#allocation8], 4
      %s54 = int_to_ptr.vmem [resolvable:$true] %s53
      %59 = dma.hbm_to_vmem [thread:$0]  %s52, 4096, %s54, [#allocation7], 256, 256, 16
    $region17: #{tpu_custom_call.1} parent=1 // pred_fallthru
      _
    // Predicated region
    $region18: #{tpu_custom_call.1} parent=1 // pred_check
      _
    $region19: #{tpu_custom_call.1} parent=1 // pred_check_branch
      %61 = sbr.rel (0) target = $region21
    $region20: #{tpu_custom_call.1} parent=1 // pred_region
      _
    $region21: #{tpu_custom_call.1} parent=1 // pred_fallthru
      _
    // Predicated region
    $region22: #{tpu_custom_call.1} parent=1 // pred_check
      _
    $region23: #{tpu_custom_call.1} parent=1 // pred_check_branch
      %63 = sbr.rel (0) target = $region25
    $region24: #{tpu_custom_call.1} parent=1 // pred_region
      %65 = vsyncadd [#allocation10], 0
      %s66 = sshll.u32 %s5, 4
      %s67 = int_to_ptr.hbm [resolvable:$true] %s66
      %s68 = sshll.u32 [#allocation9], 4
      %s69 = int_to_ptr.vmem [resolvable:$true] %s68
      %74 = dma.hbm_to_vmem [thread:$0]  %s67, 512, %s69, [#allocation10], 128, 128, 8
    $region25: #{tpu_custom_call.1} parent=1 // pred_fallthru
      _
    // Predicated region
    $region26: #{tpu_custom_call.1} parent=1 // pred_check
      _
    $region27: #{tpu_custom_call.1} parent=1 // pred_check_branch
      %76 = sbr.rel (0) target = $region29
    $region28: #{tpu_custom_call.1} parent=1 // pred_region
      %78 = dma.done [#allocation4], 512
    $region29: #{tpu_custom_call.1} parent=1 // pred_fallthru
      _
    // Predicated region
    $region30: #{tpu_custom_call.1} parent=1 // pred_check
      _
    $region31: #{tpu_custom_call.1} parent=1 // pred_check_branch
      %80 = sbr.rel (0) target = $region33
    $region32: #{tpu_custom_call.1} parent=1 // pred_region
      %82 = dma.done [#allocation7], 2048
    $region33: #{tpu_custom_call.1} parent=1 // pred_fallthru
      _
    // Predicated region
    $region34: #{tpu_custom_call.1} parent=1 // pred_check
      _
    $region35: #{tpu_custom_call.1} parent=1 // pred_check_branch
      %84 = sbr.rel (0) target = $region37
    $region36: #{tpu_custom_call.1} parent=1 // pred_region
      %86 = dma.done [#allocation7], 4096
    $region37: #{tpu_custom_call.1} parent=1 // pred_fallthru
      _
    // Predicated region
    $region38: #{tpu_custom_call.1} parent=1 // pred_check
      _
    $region39: #{tpu_custom_call.1} parent=1 // pred_check_branch
      %88 = sbr.rel (0) target = $region41
    $region40: #{tpu_custom_call.1} parent=1 // pred_region
      %90 = dma.done [#allocation10], 512
    $region41: #{tpu_custom_call.1} parent=1 // pred_fallthru
      _
    %p91 = scmp.eq.s32.totalorder 0, 0
    // Predicated region
    $region42: #{tpu_custom_call.1} parent=1 // pred_check
      %p92 = pneg %p91
    $region43: #{tpu_custom_call.1} parent=1 // pred_check_branch
      %94 = sbr.rel (%p92) target = $region45
    $region44: #{tpu_custom_call.1} parent=1 // pred_region
      %95 = vst [vmem:[#allocation2] sm:$0xff] 0.0
      %96 = vst [vmem:[#allocation2 + $0x8] sm:$0xff] 0.0
      %97 = vst [vmem:[#allocation2 + $0x10] sm:$0xff] 0.0
      %98 = vst [vmem:[#allocation2 + $0x18] sm:$0xff] 0.0
    $region45: #{tpu_custom_call.1} parent=1 // pred_fallthru
      _
    %v99 = vld [vmem:[#allocation2] sm:$0xff]
    %v100 = vld [vmem:[#allocation2 + $0x8] sm:$0xff]
    %v101 = vld [vmem:[#allocation2 + $0x10] sm:$0xff]
    %v102 = vld [vmem:[#allocation2 + $0x18] sm:$0xff]
    %v103 = vld [vmem:[#allocation3] sm:$0xff]
    %v104 = vld [vmem:[#allocation3 + $0x8] sm:$0xff]
    %v105 = vld [vmem:[#allocation3 + $0x10] sm:$0xff]
    %v106 = vld [vmem:[#allocation3 + $0x18] sm:$0xff]
    %v107 = vld [vmem:[#allocation6] sm:$0xff]
    %v108 = vld [vmem:[#allocation6 + $0x8] sm:$0xff]
    %v109 = vld [vmem:[#allocation6 + $0x10] sm:$0xff]
    %v110 = vld [vmem:[#allocation6 + $0x18] sm:$0xff]
    %v111 = vld [vmem:[#allocation6 + $0x20] sm:$0xff]
    %v112 = vld [vmem:[#allocation6 + $0x28] sm:$0xff]
    %v113 = vld [vmem:[#allocation6 + $0x30] sm:$0xff]
    %v114 = vld [vmem:[#allocation6 + $0x38] sm:$0xff]
    %v115 = vld [vmem:[#allocation6 + $0x40] sm:$0xff]
    %v116 = vld [vmem:[#allocation6 + $0x48] sm:$0xff]
    %v117 = vld [vmem:[#allocation6 + $0x50] sm:$0xff]
    %v118 = vld [vmem:[#allocation6 + $0x58] sm:$0xff]
    %v119 = vld [vmem:[#allocation6 + $0x60] sm:$0xff]
    %v120 = vld [vmem:[#allocation6 + $0x68] sm:$0xff]
    %v121 = vld [vmem:[#allocation6 + $0x70] sm:$0xff]
    %v122 = vld [vmem:[#allocation6 + $0x78] sm:$0xff]
    %123 = vmatpush.msra.mxu0 %v122
    %124 = vmatpush.msra.mxu0 %v121
    %125 = vmatpush.msra.mxu0 %v120
    %126 = vmatpush.msra.mxu0 %v119
    %127 = vmatpush.msra.mxu0 %v118
    %128 = vmatpush.msra.mxu0 %v117
    %129 = vmatpush.msra.mxu0 %v116
    %130 = vmatpush.msra.mxu0 %v115
    %131 = vmatpush.msra.mxu0 %v114
    %132 = vmatpush.msra.mxu0 %v113
    %133 = vmatpush.msra.mxu0 %v112
    %134 = vmatpush.msra.mxu0 %v111
    %135 = vmatpush.msra.mxu0 %v110
    %136 = vmatpush.msra.mxu0 %v109
    %137 = vmatpush.msra.mxu0 %v108
    %138 = vmatpush.msra.mxu0 %v107
    %139 = vmatmul.f32.gmra.mxu0 %v103
    %v140 = vpop.f32.mrf.mxu0
    %v141 = vadd.f32 0.0, %v140
    %142 = vmatmul.f32.gmra.mxu0 %v104
    %v143 = vpop.f32.mrf.mxu0
    %v144 = vadd.f32 0.0, %v143
    %145 = vmatmul.f32.gmra.mxu0 %v105
    %v146 = vpop.f32.mrf.mxu0
    %v147 = vadd.f32 0.0, %v146
    %148 = vmatmul.f32.gmra.mxu0 %v106
    %v149 = vpop.f32.mrf.mxu0
    %v150 = vadd.f32 0.0, %v149
    %151 = vdwg.mxu0
    %v152 = vadd.f32 %v99, %v141
    %v153 = vadd.f32 %v100, %v144
    %v154 = vadd.f32 %v101, %v147
    %v155 = vadd.f32 %v102, %v150
    %156 = vst [vmem:[#allocation2] sm:$0xff] %v152
    %157 = vst [vmem:[#allocation2 + $0x8] sm:$0xff] %v153
    %158 = vst [vmem:[#allocation2 + $0x10] sm:$0xff] %v154
    %159 = vst [vmem:[#allocation2 + $0x18] sm:$0xff] %v155
    // Predicated region
    $region46: #{tpu_custom_call.1} parent=1 // pred_check
      %p160 = pneg %p91
    $region47: #{tpu_custom_call.1} parent=1 // pred_check_branch
      %162 = sbr.rel (%p160) target = $region49
    $region48: #{tpu_custom_call.1} parent=1 // pred_region
      %v163 = vld [vmem:[#allocation2] sm:$0xff]
      %v164 = vld [vmem:[#allocation2 + $0x8] sm:$0xff]
      %v165 = vld [vmem:[#allocation2 + $0x10] sm:$0xff]
      %v166 = vld [vmem:[#allocation2 + $0x18] sm:$0xff]
      %v167 = vld [vmem:[%s2] sm:$0x1]
      %v169 = vperm.slane %v167, 0
      %v171 = vadd.f32 %v163, %v169
      %v172 = vadd.f32 %v164, %v169
      %v173 = vadd.f32 %v165, %v169
      %v174 = vadd.f32 %v166, %v169
      %v175 = vmax.f32 %v171, 0.0
      %v176 = vmax.f32 %v172, 0.0
      %v177 = vmax.f32 %v173, 0.0
      %v178 = vmax.f32 %v174, 0.0
      %v179 = vld [vmem:[#allocation8] sm:$0xff]
      %v180 = vld [vmem:[#allocation8 + $0x8] sm:$0xff]
      %v181 = vld [vmem:[#allocation8 + $0x10] sm:$0xff]
      %v182 = vld [vmem:[#allocation8 + $0x18] sm:$0xff]
      %v183 = vld [vmem:[#allocation8 + $0x20] sm:$0xff]
      %v184 = vld [vmem:[#allocation8 + $0x28] sm:$0xff]
      %v185 = vld [vmem:[#allocation8 + $0x30] sm:$0xff]
      %v186 = vld [vmem:[#allocation8 + $0x38] sm:$0xff]
      %v187 = vld [vmem:[#allocation8 + $0x40] sm:$0xff]
      %v188 = vld [vmem:[#allocation8 + $0x48] sm:$0xff]
      %v189 = vld [vmem:[#allocation8 + $0x50] sm:$0xff]
      %v190 = vld [vmem:[#allocation8 + $0x58] sm:$0xff]
      %v191 = vld [vmem:[#allocation8 + $0x60] sm:$0xff]
      %v192 = vld [vmem:[#allocation8 + $0x68] sm:$0xff]
      %v193 = vld [vmem:[#allocation8 + $0x70] sm:$0xff]
      %v194 = vld [vmem:[#allocation8 + $0x78] sm:$0xff]
      %v195 = vld [vmem:[#allocation8 + $0x80] sm:$0xff]
      %v196 = vld [vmem:[#allocation8 + $0x88] sm:$0xff]
      %v197 = vld [vmem:[#allocation8 + $0x90] sm:$0xff]
      %v198 = vld [vmem:[#allocation8 + $0x98] sm:$0xff]
      %v199 = vld [vmem:[#allocation8 + $0xa0] sm:$0xff]
      %v200 = vld [vmem:[#allocation8 + $0xa8] sm:$0xff]
      %v201 = vld [vmem:[#allocation8 + $0xb0] sm:$0xff]
      %v202 = vld [vmem:[#allocation8 + $0xb8] sm:$0xff]
      %v203 = vld [vmem:[#allocation8 + $0xc0] sm:$0xff]
      %v204 = vld [vmem:[#allocation8 + $0xc8] sm:$0xff]
      %v205 = vld [vmem:[#allocation8 + $0xd0] sm:$0xff]
      %v206 = vld [vmem:[#allocation8 + $0xd8] sm:$0xff]
      %v207 = vld [vmem:[#allocation8 + $0xe0] sm:$0xff]
      %v208 = vld [vmem:[#allocation8 + $0xe8] sm:$0xff]
      %v209 = vld [vmem:[#allocation8 + $0xf0] sm:$0xff]
      %v210 = vld [vmem:[#allocation8 + $0xf8] sm:$0xff]
      %v211 = vld [vmem:[%s4] sm:$0x3]
      %v213 = vperm.slane %v211, 0
      %v214 = vperm.slane %v211, 1
      %217 = vmatpush.msra.mxu0 %v209
      %218 = vmatpush.msra.mxu0 %v207
      %219 = vmatpush.msra.mxu0 %v205
      %220 = vmatpush.msra.mxu0 %v203
      %221 = vmatpush.msra.mxu0 %v201
      %222 = vmatpush.msra.mxu0 %v199
      %223 = vmatpush.msra.mxu0 %v197
      %224 = vmatpush.msra.mxu0 %v195
      %225 = vmatpush.msra.mxu0 %v193
      %226 = vmatpush.msra.mxu0 %v191
      %227 = vmatpush.msra.mxu0 %v189
      %228 = vmatpush.msra.mxu0 %v187
      %229 = vmatpush.msra.mxu0 %v185
      %230 = vmatpush.msra.mxu0 %v183
      %231 = vmatpush.msra.mxu0 %v181
      %232 = vmatpush.msra.mxu0 %v179
      %233 = vmatmul.f32.gmra.mxu0 %v175
      %v234 = vpop.f32.mrf.mxu0
      %v235 = vadd.f32 %v213, %v234
      %236 = vmatmul.f32.gmra.mxu0 %v176
      %v237 = vpop.f32.mrf.mxu0
      %v238 = vadd.f32 %v213, %v237
      %239 = vmatmul.f32.gmra.mxu0 %v177
      %v240 = vpop.f32.mrf.mxu0
      %v241 = vadd.f32 %v213, %v240
      %242 = vmatmul.f32.gmra.mxu0 %v178
      %v243 = vpop.f32.mrf.mxu0
      %v244 = vadd.f32 %v213, %v243
      %245 = vdwg.mxu0
      %246 = vmatpush.msra.mxu0 %v210
      %247 = vmatpush.msra.mxu0 %v208
      %248 = vmatpush.msra.mxu0 %v206
      %249 = vmatpush.msra.mxu0 %v204
      %250 = vmatpush.msra.mxu0 %v202
      %251 = vmatpush.msra.mxu0 %v200
      %252 = vmatpush.msra.mxu0 %v198
      %253 = vmatpush.msra.mxu0 %v196
      %254 = vmatpush.msra.mxu0 %v194
      %255 = vmatpush.msra.mxu0 %v192
      %256 = vmatpush.msra.mxu0 %v190
      %257 = vmatpush.msra.mxu0 %v188
      %258 = vmatpush.msra.mxu0 %v186
      %259 = vmatpush.msra.mxu0 %v184
      %260 = vmatpush.msra.mxu0 %v182
      %261 = vmatpush.msra.mxu0 %v180
      %262 = vmatmul.f32.gmra.mxu0 %v175
      %v263 = vpop.f32.mrf.mxu0
      %v264 = vadd.f32 %v214, %v263
      %265 = vmatmul.f32.gmra.mxu0 %v176
      %v266 = vpop.f32.mrf.mxu0
      %v267 = vadd.f32 %v214, %v266
      %268 = vmatmul.f32.gmra.mxu0 %v177
      %v269 = vpop.f32.mrf.mxu0
      %v270 = vadd.f32 %v214, %v269
      %271 = vmatmul.f32.gmra.mxu0 %v178
      %v272 = vpop.f32.mrf.mxu0
      %v273 = vadd.f32 %v214, %v272
      %274 = vdwg.mxu0
      %v275 = vmul.f32 %v264, 1.442695
      %v276 = vpow.pop %v275
      %v277 = vmul.f32 %v267, 1.442695
      %v278 = vpow.pop %v277
      %v279 = vmul.f32 %v270, 1.442695
      %v280 = vpow.pop %v279
      %v281 = vmul.f32 %v273, 1.442695
      %v282 = vpow.pop %v281
      %v283 = vadd.f32 %v276, 0.0001
      %v284 = vadd.f32 %v278, 0.0001
      %v285 = vadd.f32 %v280, 0.0001
      %v286 = vadd.f32 %v282, 0.0001
      %v287 = vrsqrt.pop %v283
      %v288 = vmul.f32 %v287, %v283
      %v289 = vmul.f32 %v288, %v287
      %v290 = vmul.f32 0.5, %v289
      %v291 = vsub.f32 1.5, %v290
      %v292 = vmul.f32 %v287, %v291
      %v293 = vmul.f32 %v283, %v292
      %vm294 = vcmp.eq.f32.partialorder %v283, inf
      %v295 = vsel %vm294, %v283, %v293
      %vm296 = vcmp.eq.f32.partialorder %v283, 0.0
      %v297 = vand.u32 %v283, 2147483648
      %v298 = vsel %vm296, %v297, %v295
      %v299 = vrsqrt.pop %v284
      %v300 = vmul.f32 %v299, %v284
      %v301 = vmul.f32 %v300, %v299
      %v302 = vmul.f32 0.5, %v301
      %v303 = vsub.f32 1.5, %v302
      %v304 = vmul.f32 %v299, %v303
      %v305 = vmul.f32 %v284, %v304
      %vm306 = vcmp.eq.f32.partialorder %v284, inf
      %v307 = vsel %vm306, %v284, %v305
      %vm308 = vcmp.eq.f32.partialorder %v284, 0.0
      %v309 = vand.u32 %v284, 2147483648
      %v310 = vsel %vm308, %v309, %v307
      %v311 = vrsqrt.pop %v285
      %v312 = vmul.f32 %v311, %v285
      %v313 = vmul.f32 %v312, %v311
      %v314 = vmul.f32 0.5, %v313
      %v315 = vsub.f32 1.5, %v314
      %v316 = vmul.f32 %v311, %v315
      %v317 = vmul.f32 %v285, %v316
      %vm318 = vcmp.eq.f32.partialorder %v285, inf
      %v319 = vsel %vm318, %v285, %v317
      %vm320 = vcmp.eq.f32.partialorder %v285, 0.0
      %v321 = vand.u32 %v285, 2147483648
      %v322 = vsel %vm320, %v321, %v319
      %v323 = vrsqrt.pop %v286
      %v324 = vmul.f32 %v323, %v286
      %v325 = vmul.f32 %v324, %v323
      %v326 = vmul.f32 0.5, %v325
      %v327 = vsub.f32 1.5, %v326
      %v328 = vmul.f32 %v323, %v327
      %v329 = vmul.f32 %v286, %v328
      %vm330 = vcmp.eq.f32.partialorder %v286, inf
      %v331 = vsel %vm330, %v286, %v329
      %vm332 = vcmp.eq.f32.partialorder %v286, 0.0
      %v333 = vand.u32 %v286, 2147483648
      %v334 = vsel %vm332, %v333, %v331
      %v335 = vld [vmem:[#allocation9] sm:$0xff]
      %v336 = vld [vmem:[#allocation9 + $0x8] sm:$0xff]
      %v337 = vld [vmem:[#allocation9 + $0x10] sm:$0xff]
      %v338 = vld [vmem:[#allocation9 + $0x18] sm:$0xff]
      %v339 = vmul.f32 %v298, %v335
      %v340 = vmul.f32 %v310, %v336
      %v341 = vmul.f32 %v322, %v337
      %v342 = vmul.f32 %v334, %v338
      %v343 = vadd.f32 %v235, %v339
      %v344 = vadd.f32 %v238, %v340
      %v345 = vadd.f32 %v241, %v341
      %v346 = vadd.f32 %v244, %v342
      %347 = vst [vmem:[#allocation11] sm:$0xff] %v235
      %348 = vst [vmem:[#allocation11 + $0x8] sm:$0xff] %v238
      %349 = vst [vmem:[#allocation11 + $0x10] sm:$0xff] %v241
      %350 = vst [vmem:[#allocation11 + $0x18] sm:$0xff] %v244
      %351 = vst [vmem:[#allocation12] sm:$0xff] %v283
      %352 = vst [vmem:[#allocation12 + $0x8] sm:$0xff] %v284
      %353 = vst [vmem:[#allocation12 + $0x10] sm:$0xff] %v285
      %354 = vst [vmem:[#allocation12 + $0x18] sm:$0xff] %v286
      %355 = vst [vmem:[#allocation14] sm:$0xff] %v343
      %356 = vst [vmem:[#allocation14 + $0x8] sm:$0xff] %v344
      %357 = vst [vmem:[#allocation14 + $0x10] sm:$0xff] %v345
      %358 = vst [vmem:[#allocation14 + $0x18] sm:$0xff] %v346
    $region49: #{tpu_custom_call.1} parent=1 // pred_fallthru
      _
    // Predicated region
    $region50: #{tpu_custom_call.1} parent=1 // pred_check
      _
    $region51: #{tpu_custom_call.1} parent=1 // pred_check_branch
      %360 = sbr.rel (0) target = $region53
    $region52: #{tpu_custom_call.1} parent=1 // pred_region
      %362 = vsyncadd [#allocation5], 0
      %s363 = sshll.u32 [#allocation11], 4
      %s364 = int_to_ptr.vmem [resolvable:$true] %s363
      %s365 = sshll.u32 %s6, 4
      %s366 = int_to_ptr.hbm [resolvable:$true] %s365
      %371 = dma.vmem_to_hbm [thread:$0]  %s364, 512, %s366, [#allocation5], 128, 128, 8
    $region53: #{tpu_custom_call.1} parent=1 // pred_fallthru
      _
    // Predicated region
    $region54: #{tpu_custom_call.1} parent=1 // pred_check
      _
    $region55: #{tpu_custom_call.1} parent=1 // pred_check_branch
      %373 = sbr.rel (0) target = $region57
    $region56: #{tpu_custom_call.1} parent=1 // pred_region
      %375 = vsyncadd [#allocation13], 0
      %s376 = sshll.u32 [#allocation12], 4
      %s377 = int_to_ptr.vmem [resolvable:$true] %s376
      %s378 = sshll.u32 %s7, 4
      %s379 = int_to_ptr.hbm [resolvable:$true] %s378
      %384 = dma.vmem_to_hbm [thread:$0]  %s377, 512, %s379, [#allocation13], 128, 128, 8
    $region57: #{tpu_custom_call.1} parent=1 // pred_fallthru
      _
    // Predicated region
    $region58: #{tpu_custom_call.1} parent=1 // pred_check
      _
    $region59: #{tpu_custom_call.1} parent=1 // pred_check_branch
      %386 = sbr.rel (0) target = $region61
    $region60: #{tpu_custom_call.1} parent=1 // pred_region
      %388 = vsyncadd [#allocation13], 0
      %s389 = sshll.u32 [#allocation14], 4
      %s390 = int_to_ptr.vmem [resolvable:$true] %s389
      %s391 = sshll.u32 %s8, 4
      %s392 = int_to_ptr.hbm [resolvable:$true] %s391
      %397 = dma.vmem_to_hbm [thread:$0]  %s390, 512, %s392, [#allocation13], 128, 128, 8
    $region61: #{tpu_custom_call.1} parent=1 // pred_fallthru
      _
    // Predicated region
    $region62: #{tpu_custom_call.1} parent=1 // pred_check
      _
    $region63: #{tpu_custom_call.1} parent=1 // pred_check_branch
      %399 = sbr.rel (0) target = $region65
    $region64: #{tpu_custom_call.1} parent=1 // pred_region
      %401 = dma.done [#allocation5], 512
    $region65: #{tpu_custom_call.1} parent=1 // pred_fallthru
      _
    // Predicated region
    $region66: #{tpu_custom_call.1} parent=1 // pred_check
      _
    $region67: #{tpu_custom_call.1} parent=1 // pred_check_branch
      %403 = sbr.rel (0) target = $region69
    $region68: #{tpu_custom_call.1} parent=1 // pred_region
      %405 = dma.done [#allocation13], 512
    $region69: #{tpu_custom_call.1} parent=1 // pred_fallthru
      _
    // Predicated region
    $region70: #{tpu_custom_call.1} parent=1 // pred_check
      _
    $region71: #{tpu_custom_call.1} parent=1 // pred_check_branch
      %407 = sbr.rel (0) target = $region73
    $region72: #{tpu_custom_call.1} parent=1 // pred_region
      %409 = dma.done [#allocation13], 512
    $region73: #{tpu_custom_call.1} parent=1 // pred_fallthru
      _
    %410 = vsyncpa [#allocation4], 1
    %411 = vsyncpa [#allocation7], 1
    %412 = vsyncpa [#allocation10], 1
    %413 = vsyncpa [#allocation5], 1
    %414 = vsyncpa [#allocation13], 1

</llo_original>
